<compile_context>
chip_gen: v5e
topology: v5e:2x2
jax: 0.10.0
libtpu: 0.0.40
codegen_flags: <defaults>
</compile_context>

<pallas_src>
import functools

import jax
import jax.numpy as jnp
from jax import lax
from jax.experimental import pallas as pl
from jax.experimental.pallas import tpu as pltpu


def _round_up(x, m):
    return (x + m - 1) // m * m


def _conv_embed_kernel(x_ref, w_ref, b_ref, o_ref, *, t_out, fw):
    """Conv taps (MXU) -> masked max-over-time -> bias + tanh on the pooled result.

    x_ref: (TB, S_pad, D)  bf16 zero-padded embeddings, S_pad = T_al + fw - 1, T_al % 8 == 0
    w_ref: (fw, D, C_pad)  bf16 conv weights, tap-major, C padded to lane width
    b_ref: (1, C_pad)      f32 conv bias (zero on padded channels)
    o_ref: (TB, C_pad)     f32 pooled output (lane-dense)
    """
    tb, s_pad, d = x_ref.shape
    c_pad = w_ref.shape[2]
    t_al = s_pad - (fw - 1)            # multiple of 8 by construction (>= t_out)

    # acc[b*t, c] = sum_k x_pad[b, t+k, :] @ W[k]   (cross-correlation == PyTorch Conv2d)
    acc = jnp.zeros((tb * t_al, c_pad), jnp.float32)
    for k in range(fw):                # fw is small & static -> fully unrolled
        xk = x_ref[:, k:k + t_al, :]   # ref-window load (address offsets, no value copy)
        xk = xk.reshape(tb * t_al, d)  # t_al % 8 == 0 -> layout-preserving merge
        acc = acc + jnp.dot(xk, w_ref[k], preferred_element_type=jnp.float32)

    # Pool first (mask out the t >= t_out alignment rows), then bias + tanh on (TB, C_pad).
    acc = acc.reshape(tb, t_al, c_pad)
    t_idx = lax.broadcasted_iota(jnp.int32, (tb, t_al, c_pad), 1)
    acc = jnp.where(t_idx < t_out, acc, -jnp.inf)
    pooled = jnp.max(acc, axis=1)                                   # (TB, C_pad)
    o_ref[...] = jnp.tanh(pooled + b_ref[...]).astype(o_ref.dtype)  # tanh(max_t a + b) == max_t tanh(a + b)


def _choose_batch_tile(B, s_pad, D, c_pad):
    """Batch tile: full batch if it fits, else the largest multiple of 8 dividing B under a
    VMEM budget that is safe for v7x (64 MiB physical / 32 MiB default scoped)."""
    budget = 16 << 20
    bytes_per_b = 2 * (s_pad * D * 2)      # double-buffered bf16 input block
    bytes_per_b += 2 * (c_pad * 4)         # double-buffered f32 output block
    bytes_per_b += 8 * s_pad * c_pad       # f32 accumulator / intermediates headroom
    cap = max(1, budget // bytes_per_b)
    if B <= cap:
        return B
    tb = min(cap, B) // 8 * 8
    while tb >= 8 and B % tb:
        tb -= 8
    return tb if tb >= 8 else B


def convolutional_embedding(token_ids, embed_table, conv_w, conv_b, *, filter_width):
    """Forward pass of Convolutional_Embedding (embed_mode == 'random').

    token_ids:   (B, S) int32
    embed_table: (V, D) float32          (nn.Embedding weight)
    conv_w:      (C, 1, fw, D) float32   (nn.Conv2d weight, PyTorch layout)
    conv_b:      (C,) float32            (nn.Conv2d bias)
    returns:     (B, C) float32
    """
    B, S = token_ids.shape
    V, D = embed_table.shape
    C = conv_w.shape[0]
    fw = filter_width

    t_out = S + fw - 1                   # conv output length with padding = (fw - 1, 0)
    t_al = _round_up(t_out, 8)           # sublane-aligned time extent used inside the kernel
    s_pad = t_al + fw - 1                # padded input length (extra tail zeros are masked out)
    c_pad = _round_up(C, 128)            # lane-dense channel axis

    # --- glue (plain JAX): embedding gather + zero padding + weight repack ---
    # TODO(synk): fold the embedding gather into the kernel (PrefetchScalarGridSpec row-gather
    # DMA) to remove the remaining HBM round-trip of the padded activations.
    emb = embed_table[token_ids].astype(jnp.bfloat16)                     # (B, S, D)
    x = jnp.pad(emb, ((0, 0), (fw - 1, s_pad - S - (fw - 1)), (0, 0)))    # (B, s_pad, D)
    w = jnp.transpose(conv_w[:, 0, :, :], (1, 2, 0))                      # (fw, D, C)
    w = jnp.pad(w, ((0, 0), (0, 0), (0, c_pad - C))).astype(jnp.bfloat16)
    b = jnp.pad(conv_b, (0, c_pad - C)).reshape(1, c_pad).astype(jnp.float32)

    tb = _choose_batch_tile(B, s_pad, D, c_pad)
    grid = (B // tb,)

    kernel = functools.partial(_conv_embed_kernel, t_out=t_out, fw=fw)

    out = pl.pallas_call(
        kernel,
        out_shape=jax.ShapeDtypeStruct((B, c_pad), jnp.float32),
        grid=grid,
        in_specs=[
            pl.BlockSpec((tb, s_pad, D), lambda i: (i, 0, 0)),
            pl.BlockSpec((fw, D, c_pad), lambda i: (0, 0, 0)),
            pl.BlockSpec((1, c_pad), lambda i: (0, 0)),
        ],
        out_specs=pl.BlockSpec((tb, c_pad), lambda i: (i, 0)),
        compiler_params=pltpu.CompilerParams(dimension_semantics=("parallel",)),
    )(x, w, b)
    return out[:, :C]


def _reference(token_ids, embed_table, conv_w, conv_b, fw):
    """Pure-JAX f32 reference mirroring the PyTorch forward."""
    emb = embed_table[token_ids]                                  # (B, S, D)
    B, S, D = emb.shape
    C = conv_w.shape[0]
    t_out = S + fw - 1
    x_pad = jnp.pad(emb, ((0, 0), (fw - 1, fw - 1), (0, 0)))
    acc = jnp.zeros((B, t_out, C), jnp.float32)
    for k in range(fw):
        acc = acc + jnp.einsum("btd,cd->btc", x_pad[:, k:k + t_out, :], conv_w[:, 0, k, :])
    acc = acc + conv_b[None, None, :]
    return jnp.max(jnp.tanh(acc), axis=1)                         # (B, C)


if __name__ == "__main__":
    # config implied by the module's __init__
    config = dict(words_dim=32, embed_mode="random", output_channel=16,
                  filter_width=3, vocab_size=64, dropout=0.5)
    B, S = 2, 8
    D = config["words_dim"]
    C = config["output_channel"]
    fw = config["filter_width"]
    V = config["vocab_size"]

    key = jax.random.PRNGKey(0)
    k_ids, k_emb, k_w, k_b = jax.random.split(key, 4)
    token_ids = jax.random.randint(k_ids, (B, S), 0, V, dtype=jnp.int32)
    embed_table = jax.random.normal(k_emb, (V, D), dtype=jnp.float32)
    conv_w = 0.1 * jax.random.normal(k_w, (C, 1, fw, D), dtype=jnp.float32)
    conv_b = 0.1 * jax.random.normal(k_b, (C,), dtype=jnp.float32)

    out = convolutional_embedding(token_ids, embed_table, conv_w, conv_b, filter_width=fw)
    out = jax.block_until_ready(out)

    ref = _reference(token_ids, embed_table, conv_w, conv_b, fw)
    assert out.shape == (B, C), out.shape
    # bf16 MXU inputs with f32 accumulation -> loosened tolerance vs the f32 reference.
    assert jnp.allclose(out, ref, atol=3e-2, rtol=3e-2), (out, ref)

    print("KERNEL_OK")
</pallas_src>

<mosaic_0001>
module attributes {stable_mosaic.version = 11 : i64} {
  func.func @_conv_embed_kernel(%arg0: i32, %arg1: memref<2x18x32xbf16, #tpu.memory_space<vmem>>, %arg2: memref<3x32x128xbf16, #tpu.memory_space<vmem>>, %arg3: memref<1x128xf32, #tpu.memory_space<vmem>>, %arg4: memref<2x128xf32, #tpu.memory_space<vmem>>) attributes {dimension_semantics = [#tpu.dimension_semantics<parallel>], iteration_bounds = array<i64: 1>, scalar_prefetch = 0 : i64, scratch_operands = 0 : i64, tpu.core_type = #tpu.core_type<tc>, window_params = [{transform_indices = @transform_0, window_bounds = array<i64: 2, 18, 32>}, {pipeline_mode = #tpu.pipeline_mode<synchronous>, transform_indices = @transform_1, window_bounds = array<i64: 3, 32, 128>}, {pipeline_mode = #tpu.pipeline_mode<synchronous>, transform_indices = @transform_2, window_bounds = array<i64: 1, 128>}, {transform_indices = @transform_3, window_bounds = array<i64: 2, 128>}]} {
    %cst = arith.constant 0.000000e+00 : f32
    %0 = vector.broadcast %cst : f32 to vector<32x128xf32>
    %c0 = arith.constant 0 : index
    %c0_0 = arith.constant 0 : index
    %c0_1 = arith.constant 0 : index
    %1 = vector.load %arg1[%c0, %c0_0, %c0_1] : memref<2x18x32xbf16, #tpu.memory_space<vmem>>, vector<2x16x32xbf16>
    %2 = vector.shape_cast %1 : vector<2x16x32xbf16> to vector<32x32xbf16>
    %c0_2 = arith.constant 0 : index
    %c0_3 = arith.constant 0 : index
    %c0_4 = arith.constant 0 : index
    %3 = vector.load %arg2[%c0_2, %c0_3, %c0_4] : memref<3x32x128xbf16, #tpu.memory_space<vmem>>, vector<1x32x128xbf16>
    %4 = vector.shape_cast %3 : vector<1x32x128xbf16> to vector<32x128xbf16>
    %cst_5 = arith.constant dense<0.000000e+00> : vector<32x128xf32>
    %5 = tpu.matmul %2, %4, %cst_5 {dimension_numbers = #tpu.dot_dimension_numbers<[1], [0], [0], [1], [0, 0, 1, 1], [], []>} : vector<32x32xbf16>, vector<32x128xbf16>, vector<32x128xf32> -> vector<32x128xf32>
    %6 = arith.addf %0, %5 : vector<32x128xf32>
    %c0_6 = arith.constant 0 : index
    %c1 = arith.constant 1 : index
    %c0_7 = arith.constant 0 : index
    %7 = vector.load %arg1[%c0_6, %c1, %c0_7] : memref<2x18x32xbf16, #tpu.memory_space<vmem>>, vector<2x16x32xbf16>
    %8 = vector.shape_cast %7 : vector<2x16x32xbf16> to vector<32x32xbf16>
    %c1_8 = arith.constant 1 : index
    %c0_9 = arith.constant 0 : index
    %c0_10 = arith.constant 0 : index
    %9 = vector.load %arg2[%c1_8, %c0_9, %c0_10] : memref<3x32x128xbf16, #tpu.memory_space<vmem>>, vector<1x32x128xbf16>
    %10 = vector.shape_cast %9 : vector<1x32x128xbf16> to vector<32x128xbf16>
    %cst_11 = arith.constant dense<0.000000e+00> : vector<32x128xf32>
    %11 = tpu.matmul %8, %10, %cst_11 {dimension_numbers = #tpu.dot_dimension_numbers<[1], [0], [0], [1], [0, 0, 1, 1], [], []>} : vector<32x32xbf16>, vector<32x128xbf16>, vector<32x128xf32> -> vector<32x128xf32>
    %12 = arith.addf %6, %11 : vector<32x128xf32>
    %c0_12 = arith.constant 0 : index
    %c2 = arith.constant 2 : index
    %c0_13 = arith.constant 0 : index
    %13 = vector.load %arg1[%c0_12, %c2, %c0_13] : memref<2x18x32xbf16, #tpu.memory_space<vmem>>, vector<2x16x32xbf16>
    %14 = vector.shape_cast %13 : vector<2x16x32xbf16> to vector<32x32xbf16>
    %c2_14 = arith.constant 2 : index
    %c0_15 = arith.constant 0 : index
    %c0_16 = arith.constant 0 : index
    %15 = vector.load %arg2[%c2_14, %c0_15, %c0_16] : memref<3x32x128xbf16, #tpu.memory_space<vmem>>, vector<1x32x128xbf16>
    %16 = vector.shape_cast %15 : vector<1x32x128xbf16> to vector<32x128xbf16>
    %cst_17 = arith.constant dense<0.000000e+00> : vector<32x128xf32>
    %17 = tpu.matmul %14, %16, %cst_17 {dimension_numbers = #tpu.dot_dimension_numbers<[1], [0], [0], [1], [0, 0, 1, 1], [], []>} : vector<32x32xbf16>, vector<32x128xbf16>, vector<32x128xf32> -> vector<32x128xf32>
    %18 = arith.addf %12, %17 : vector<32x128xf32>
    %19 = vector.shape_cast %18 : vector<32x128xf32> to vector<2x16x128xf32>
    %20 = tpu.iota {dimensions = array<i32: 1>} : vector<2x16x128xi32>
    %c10_i32 = arith.constant 10 : i32
    %21 = vector.broadcast %c10_i32 : i32 to vector<2x16x128xi32>
    %22 = arith.cmpi slt, %20, %21 : vector<2x16x128xi32>
    %cst_18 = arith.constant 0xFF800000 : f32
    %23 = vector.broadcast %cst_18 : f32 to vector<2x16x128xf32>
    %24 = arith.select %22, %19, %23 : vector<2x16x128xi1>, vector<2x16x128xf32>
    %cst_19 = arith.constant dense<0xFF800000> : vector<2x128xf32>
    %25 = vector.multi_reduction <maximumf>, %24, %cst_19 [1] : vector<2x16x128xf32> to vector<2x128xf32>
    %c0_20 = arith.constant 0 : index
    %c0_21 = arith.constant 0 : index
    %26 = vector.load %arg3[%c0_20, %c0_21] : memref<1x128xf32, #tpu.memory_space<vmem>>, vector<1x128xf32>
    %27 = vector.broadcast %26 : vector<1x128xf32> to vector<2x128xf32>
    %28 = arith.addf %25, %27 : vector<2x128xf32>
    %29 = math.tanh %28 : vector<2x128xf32>
    %c0_22 = arith.constant 0 : index
    %c0_23 = arith.constant 0 : index
    %30 = vector.load %arg4[%c0_22, %c0_23] : memref<2x128xf32, #tpu.memory_space<vmem>>, vector<2x128xf32>
    tpu.vector_store %arg4[%c0_22, %c0_23], %29 {strides = array<i32>} : memref<2x128xf32, #tpu.memory_space<vmem>>, vector<2x128xf32>,
    return
  }
  func.func @transform_0(%arg0: i32) -> (i32, i32, i32) {
    %c0_i32 = arith.constant 0 : i32
    %c0_i32_0 = arith.constant 0 : i32
    %c0_i32_1 = arith.constant 0 : i32
    return %arg0, %c0_i32, %c0_i32_0 : i32, i32, i32
  }
  func.func @transform_1(%arg0: i32) -> (i32, i32, i32) {
    %c0_i32 = arith.constant 0 : i32
    %c0_i32_0 = arith.constant 0 : i32
    %c0_i32_1 = arith.constant 0 : i32
    %c0_i32_2 = arith.constant 0 : i32
    return %c0_i32, %c0_i32_0, %c0_i32_1 : i32, i32, i32
  }
  func.func @transform_2(%arg0: i32) -> (i32, i32) {
    %c0_i32 = arith.constant 0 : i32
    %c0_i32_0 = arith.constant 0 : i32
    %c0_i32_1 = arith.constant 0 : i32
    return %c0_i32, %c0_i32_0 : i32, i32
  }
  func.func @transform_3(%arg0: i32) -> (i32, i32) {
    %c0_i32 = arith.constant 0 : i32
    %c0_i32_0 = arith.constant 0 : i32
    return %arg0, %c0_i32 : i32, i32
  }
}

</mosaic_0001>

<llo_original>
// kernel: tpu_custom_call.1
$region0: #{tpu_custom_call.1}
  #allocation0 [shape = 'u32[]', space=smem, size = 0x4, offset = 0x4, fixed_abs, tag = 'smem constant byte address 0x4 - core index']
  #allocation1 [shape = 'u32[72,128]{1,0:T(1,128)}', space=vmem, size = 0x9000, scoped, tag = 'internal scratch']
  %s0 = inlined_call_operand.vmem [shape: bf16[2,18,32], index: 0, kind: input, shape index: {}]
  %s1 = inlined_call_operand.hbm [shape: bf16[3,32,128], index: 1, kind: input, shape index: {}]
  %s2 = inlined_call_operand.vmem [shape: f32[1,128], index: 2, kind: input, shape index: {}]
  %s3 = inlined_call_operand.hbm [shape: f32[2,128], index: 3, kind: output, shape index: {}]
  %s4 = sld [smem:[#allocation0]]
  $region26: #{tpu_custom_call.1} parent=0
    _
  %s6 = ssub.s32 1, %s4
  %s7 = scalar_select 0, %s6, %s4
  $region1: #{tpu_custom_call.1} parent=0
    #allocation2 [shape = 'u8[24576]{0}', space=vmem, size = 0x6000, scoped, tag = 'input window, operand 1, single buffered']
    #allocation3 [shape = 's32[1]{0}', space=sflag, size = 0x4, scoped, tag = 'scoped memory for tpu_custom_call.1']
    #allocation4 [shape = 's32[1]{0}', space=sflag, size = 0x4, scoped, tag = 'scoped memory for tpu_custom_call.1']
    #allocation5 [shape = 'u8[1024]{0}', space=vmem, size = 0x400, scoped, tag = 'output window, operand 0, single buffered']
    %8 = vsyncpa [#allocation3], 0
    %9 = vsyncpa [#allocation4], 0
    // Predicated region
    $region2: #{tpu_custom_call.1} parent=1 // pred_check
      _
    $region3: #{tpu_custom_call.1} parent=1 // pred_check_branch
      %11 = sbr.rel (0) target = $region5
    $region4: #{tpu_custom_call.1} parent=1 // pred_region
      _
    $region5: #{tpu_custom_call.1} parent=1 // pred_fallthru
      _
    // Predicated region
    $region6: #{tpu_custom_call.1} parent=1 // pred_check
      _
    $region7: #{tpu_custom_call.1} parent=1 // pred_check_branch
      %13 = sbr.rel (0) target = $region9
    $region8: #{tpu_custom_call.1} parent=1 // pred_region
      %15 = vsyncadd [#allocation3], 0
      %s16 = sshll.u32 %s1, 4
      %s17 = int_to_ptr.hbm [resolvable:$true] %s16
      %s18 = sshll.u32 [#allocation2], 4
      %s19 = int_to_ptr.vmem [resolvable:$true] %s18
      %24 = dma.hbm_to_vmem [thread:$0]  %s17, 768, %s19, [#allocation3], 64, 64, 4
    $region9: #{tpu_custom_call.1} parent=1 // pred_fallthru
      _
    // Predicated region
    $region10: #{tpu_custom_call.1} parent=1 // pred_check
      _
    $region11: #{tpu_custom_call.1} parent=1 // pred_check_branch
      %26 = sbr.rel (0) target = $region13
    $region12: #{tpu_custom_call.1} parent=1 // pred_region
      _
    $region13: #{tpu_custom_call.1} parent=1 // pred_fallthru
      _
    // Predicated region
    $region14: #{tpu_custom_call.1} parent=1 // pred_check
      _
    $region15: #{tpu_custom_call.1} parent=1 // pred_check_branch
      %28 = sbr.rel (0) target = $region17
    $region16: #{tpu_custom_call.1} parent=1 // pred_region
      %30 = dma.done [#allocation3], 768
    $region17: #{tpu_custom_call.1} parent=1 // pred_fallthru
      _
    %v32 = vld [vmem:[%s0] sm:$0xf]
    %v33 = vld [vmem:[%s0 + $0x4] sm:$0xf]
    %v34 = vld [vmem:[%s0 + $0xc] sm:$0xf]
    %v35 = vld [vmem:[%s0 + $0x10] sm:$0xf]
    %v36 = vld [vmem:[#allocation2] sm:$0xf]
    %v37 = vld [vmem:[#allocation2 + $0x4] sm:$0xf]
    %v38 = vld [vmem:[#allocation2 + $0x8] sm:$0xf]
    %v39 = vld [vmem:[#allocation2 + $0xc] sm:$0xf]
    %v40 = vld [vmem:[%s0 + $0x8] sm:$0x1]
    %v41 = vld [vmem:[%s0 + $0x14] sm:$0x1]
    %vm42 = vsmask.f32 3328
    %vm43 = vsmask.f32 7440
    %vm44 = vmor %vm42, %vm43
    %v46 = vshrl.u32 %v32, 16
    %v48 = vrot.slane %v46, 4
    %v49 = vshll.u32 %v32, 16
    %v51 = vrot.slane %v49, 5
    %v52 = vor.u32 %v48, %v51
    %v53 = vrot.slane %v52, 4
    %v55 = vshll.u32 %v33, 16
    %v57 = vrot.slane %v55, 5
    %v58 = vsel %vm44, %v53, %v57
    %v59 = vshrl.u32 %v33, 16
    %v61 = vrot.slane %v59, 4
    %v62 = vor.u32 %v61, %v57
    %v63 = vrot.slane %v62, 4
    %v65 = vshll.u32 %v40, 16
    %v67 = vrot.slane %v65, 5
    %v68 = vsel %vm44, %v63, %v67
    %v70 = vshrl.u32 %v34, 16
    %v72 = vrot.slane %v70, 4
    %v73 = vshll.u32 %v34, 16
    %v75 = vrot.slane %v73, 5
    %v76 = vor.u32 %v72, %v75
    %v77 = vrot.slane %v76, 4
    %v79 = vshll.u32 %v35, 16
    %v81 = vrot.slane %v79, 5
    %v82 = vsel %vm44, %v77, %v81
    %v83 = vshrl.u32 %v35, 16
    %v85 = vrot.slane %v83, 4
    %v86 = vor.u32 %v85, %v81
    %v87 = vrot.slane %v86, 4
    %v89 = vshll.u32 %v41, 16
    %v91 = vrot.slane %v89, 5
    %v92 = vsel %vm44, %v87, %v91
    %s93 = scalar_lea.vmem [#allocation2], 16
    %v94 = vld [vmem:[%s93] sm:$0xf]
    %v95 = vld [vmem:[%s93 + $0x4] sm:$0xf]
    %v96 = vld [vmem:[%s93 + $0x8] sm:$0xf]
    %v97 = vld [vmem:[%s93 + $0xc] sm:$0xf]
    %v98 = vunpack.c.l.b16 %v58
    %v99 = vunpack.c.l.b16 %v68
    %v100 = vunpack.c.l.b16 %v82
    %v101 = vunpack.c.l.b16 %v92
    %v102 = vpack.c.b16 %v99, %v98
    %v103 = vpack.c.b16 %v101, %v100
    %v108 = vunpack.c.l.b16 %v94
    %v109 = vunpack.c.l.b16 %v95
    %v110 = vunpack.c.l.b16 %v96
    %v111 = vunpack.c.l.b16 %v97
    %v112 = vpack.c.b16 %v109, %v108
    %v113 = vpack.c.b16 %v111, %v110
    %vm116 = vcmask 261120
    %v118 = vsel %vm116, %v102, 0
    %v121 = vsel %vm116, %v103, 0
    %123 = vmatpush.bf16.msra.mxu0 0
    %124 = vmatpush.bf16.msra.mxu0 0
    %125 = vmatpush.bf16.msra.mxu0 0
    %126 = vmatpush.bf16.msra.mxu0 0
    %127 = vmatpush.bf16.msra.mxu0 0
    %128 = vmatpush.bf16.msra.mxu0 0
    %129 = vmatpush.bf16.msra.mxu0 %v113
    %130 = vmatpush.bf16.msra.mxu0 %v112
    %131 = vmatmul.bf16.gmra.mxu0 %v118
    %v132 = vpop.f32.mrf.mxu0
    %v133 = vadd.f32 0.0, %v132
    %v134 = vpop.f32.mrf.mxu0
    %v135 = vadd.f32 0.0, %v134
    %136 = vmatmul.bf16.gmra.mxu0 %v121
    %v137 = vpop.f32.mrf.mxu0
    %v138 = vadd.f32 0.0, %v137
    %v139 = vpop.f32.mrf.mxu0
    %v140 = vadd.f32 0.0, %v139
    %141 = vdwg.mxu0
    %v146 = vunpack.c.l.b16 %v32
    %v147 = vunpack.c.l.b16 %v33
    %v148 = vunpack.c.l.b16 %v34
    %v149 = vunpack.c.l.b16 %v35
    %v150 = vpack.c.b16 %v147, %v146
    %v151 = vpack.c.b16 %v149, %v148
    %v156 = vunpack.c.l.b16 %v36
    %v157 = vunpack.c.l.b16 %v37
    %v158 = vunpack.c.l.b16 %v38
    %v159 = vunpack.c.l.b16 %v39
    %v160 = vpack.c.b16 %v157, %v156
    %v161 = vpack.c.b16 %v159, %v158
    %v165 = vsel %vm116, %v150, 0
    %v168 = vsel %vm116, %v151, 0
    %170 = vmatpush.bf16.msra.mxu0 0
    %171 = vmatpush.bf16.msra.mxu0 0
    %172 = vmatpush.bf16.msra.mxu0 0
    %173 = vmatpush.bf16.msra.mxu0 0
    %174 = vmatpush.bf16.msra.mxu0 0
    %175 = vmatpush.bf16.msra.mxu0 0
    %176 = vmatpush.bf16.msra.mxu0 %v161
    %177 = vmatpush.bf16.msra.mxu0 %v160
    %178 = vmatmul.bf16.gmra.mxu0 %v165
    %v179 = vpop.f32.mrf.mxu0
    %v180 = vadd.f32 %v133, %v179
    %v181 = vpop.f32.mrf.mxu0
    %v182 = vadd.f32 %v135, %v181
    %183 = vmatmul.bf16.gmra.mxu0 %v168
    %v184 = vpop.f32.mrf.mxu0
    %v185 = vadd.f32 %v138, %v184
    %v186 = vpop.f32.mrf.mxu0
    %v187 = vadd.f32 %v140, %v186
    %188 = vdwg.mxu0
    %v189 = vld [vmem:[%s0] sm:$0xe]
    %v190 = vld [vmem:[%s0 + $0xc] sm:$0xe]
    %vm195 = vcmask 1042432
    %vm196 = vcmask 1046532
    %vm197 = vmor %vm195, %vm196
    %v198 = vrot.slane %v189, 5
    %v199 = vrot.slane %v198, 4
    %v200 = vrot.slane %v33, 5
    %v201 = vsel %vm197, %v199, %v200
    %v202 = vrot.slane %v200, 4
    %v203 = vrot.slane %v40, 5
    %v204 = vsel %vm197, %v202, %v203
    %v205 = vrot.slane %v190, 5
    %v206 = vrot.slane %v205, 4
    %v207 = vrot.slane %v35, 5
    %v208 = vsel %vm197, %v206, %v207
    %v209 = vrot.slane %v207, 4
    %v210 = vrot.slane %v41, 5
    %v211 = vsel %vm197, %v209, %v210
    %s212 = scalar_lea.vmem [#allocation2], 32
    %v213 = vld [vmem:[%s212] sm:$0xf]
    %v214 = vld [vmem:[%s212 + $0x4] sm:$0xf]
    %v215 = vld [vmem:[%s212 + $0x8] sm:$0xf]
    %v216 = vld [vmem:[%s212 + $0xc] sm:$0xf]
    %v217 = vunpack.c.l.b16 %v201
    %v218 = vunpack.c.l.b16 %v204
    %v219 = vunpack.c.l.b16 %v208
    %v220 = vunpack.c.l.b16 %v211
    %v221 = vpack.c.b16 %v218, %v217
    %v222 = vpack.c.b16 %v220, %v219
    %v227 = vunpack.c.l.b16 %v213
    %v228 = vunpack.c.l.b16 %v214
    %v229 = vunpack.c.l.b16 %v215
    %v230 = vunpack.c.l.b16 %v216
    %v231 = vpack.c.b16 %v228, %v227
    %v232 = vpack.c.b16 %v230, %v229
    %v236 = vsel %vm116, %v221, 0
    %v239 = vsel %vm116, %v222, 0
    %241 = vmatpush.bf16.msra.mxu0 0
    %242 = vmatpush.bf16.msra.mxu0 0
    %243 = vmatpush.bf16.msra.mxu0 0
    %244 = vmatpush.bf16.msra.mxu0 0
    %245 = vmatpush.bf16.msra.mxu0 0
    %246 = vmatpush.bf16.msra.mxu0 0
    %247 = vmatpush.bf16.msra.mxu0 %v232
    %248 = vmatpush.bf16.msra.mxu0 %v231
    %249 = vmatmul.bf16.gmra.mxu0 %v236
    %v250 = vpop.f32.mrf.mxu0
    %v251 = vadd.f32 0.0, %v250
    %v252 = vpop.f32.mrf.mxu0
    %v253 = vadd.f32 0.0, %v252
    %254 = vmatmul.bf16.gmra.mxu0 %v239
    %v255 = vpop.f32.mrf.mxu0
    %v256 = vadd.f32 0.0, %v255
    %v257 = vpop.f32.mrf.mxu0
    %v258 = vadd.f32 0.0, %v257
    %259 = vdwg.mxu0
    %v260 = vadd.f32 %v180, %v251
    %v261 = vadd.f32 %v182, %v253
    %v262 = vadd.f32 %v185, %v256
    %v263 = vadd.f32 %v187, %v258
    %v264 = vlaneseq
    %v265 = vshrl.u32 %v264, 7
    %v266 = vadd.s32 %v265, 8
    %vm267 = vcmp.lt.s32.totalorder %v265, 10
    %vm268 = vcmp.lt.s32.totalorder %v266, 10
    %v269 = vsel %vm267, %v260, -inf
    %v270 = vsel %vm268, %v261, -inf
    %v271 = vsel %vm267, %v262, -inf
    %v272 = vsel %vm268, %v263, -inf
    %v273 = vmax.f32 %v269, %v270
    %v274 = vrot.slane %v273, 4
    %v275 = vmax.f32 %v273, %v274
    %v276 = vrot.slane %v275, 2
    %v277 = vmax.f32 %v275, %v276
    %v278 = vrot.slane %v277, 1
    %v279 = vmax.f32 %v277, %v278
    %v280 = vmax.f32 %v271, %v272
    %v281 = vrot.slane %v280, 4
    %v282 = vmax.f32 %v280, %v281
    %v283 = vrot.slane %v282, 2
    %v284 = vmax.f32 %v282, %v283
    %v285 = vrot.slane %v284, 1
    %v286 = vmax.f32 %v284, %v285
    %v287 = vld [vmem:[%s2] sm:$0x1]
    %v289 = vperm.slane %v287, 0
    %v291 = vadd.f32 %v279, %v289
    %v292 = vadd.f32 %v286, %v289
    %v293 = vtanh.pop %v291
    %v294 = vtanh.pop %v292
    %v297 = vrot.slane %v294, 7
    %vm298 = vcmask 1041409
    %v299 = vsel %vm298, %v297, %v293
    %301 = vst [vmem:[#allocation5] sm:$0x3] %v299
    // Predicated region
    $region18: #{tpu_custom_call.1} parent=1 // pred_check
      _
    $region19: #{tpu_custom_call.1} parent=1 // pred_check_branch
      %303 = sbr.rel (0) target = $region21
    $region20: #{tpu_custom_call.1} parent=1 // pred_region
      %305 = vsyncadd [#allocation4], 0
      %s307 = sshll.u32 [#allocation5], 4
      %s308 = int_to_ptr.vmem [resolvable:$true] %s307
      %s309 = sshll.u32 %s3, 4
      %s310 = int_to_ptr.hbm [resolvable:$true] %s309
      %312 = dma.vmem_to_hbm [thread:$0]  %s308, 32, %s310, [#allocation4]
    $region21: #{tpu_custom_call.1} parent=1 // pred_fallthru
      _
    // Predicated region
    $region22: #{tpu_custom_call.1} parent=1 // pred_check
      _
    $region23: #{tpu_custom_call.1} parent=1 // pred_check_branch
      %314 = sbr.rel (0) target = $region25
    $region24: #{tpu_custom_call.1} parent=1 // pred_region
      %316 = dma.done [#allocation4], 32
    $region25: #{tpu_custom_call.1} parent=1 // pred_fallthru
      _
    %317 = vsyncpa [#allocation3], 1
    %318 = vsyncpa [#allocation4], 1

</llo_original>
